<compile_context>
chip_gen: v7x
topology: tpu7x:2x2x1
jax: 0.10.0
libtpu: 0.0.40
codegen_flags: <defaults>
</compile_context>

<pallas_src>
import functools

import jax
import jax.numpy as jnp
from jax import lax
from jax.experimental import pallas as pl


def _conv_bn_relu_kernel(x_ref, w_ref, b_ref, g_ref, bt_ref, o_ref, *,
                         n, oh, ow, c_in, kh, kw, use_relu, eps):
    """Fused stride-2 3x3 conv + bias + training-mode BN + ReLU.

    x_ref : (4, N, Hp/2, Wp/2, C_in)  phase-split padded input (phase = 2*ph_h+ph_w)
    w_ref : (KH*KW, C_out, C_in)      conv weight, tap-major
    b_ref, g_ref, bt_ref : (C_out, 1) conv bias, BN gamma, BN beta
    o_ref : (C_out, M) with M = N*OH*OW  (lane-dense, one vreg for 8x128)
    """
    m = n * oh * ow
    c_out = o_ref.shape[0]

    # Conv as 9 accumulating per-tap matmuls; output kept transposed (C_out, M).
    acc = jnp.zeros((c_out, m), jnp.float32)
    for ki in range(kh):
        for kj in range(kw):
            phase = x_ref[(ki % 2) * 2 + (kj % 2)]            # (N, Hp/2, Wp/2, C_in)
            ah, aw = ki // 2, kj // 2
            slab = phase[:, ah:ah + oh, aw:aw + ow, :]        # (N, OH, OW, C_in)
            a_t = slab.reshape(m, c_in)                       # (M, C_in)  lane = C_in
            w_t = w_ref[ki * kw + kj]                         # (C_out, C_in)
            # A·B^T form: contract C_in of both -> (C_out, M), lane-dense result.
            acc = acc + lax.dot_general(
                w_t, a_t, (((1,), (1,)), ((), ())),
                preferred_element_type=jnp.float32)

    y = acc + b_ref[...]                                      # (C_out, M) + (C_out, 1)

    # Training-mode BatchNorm over the (N, OH, OW) axis = lane reduction.
    # Centered variance (numerically safer than E[y^2] - E[y]^2).
    mean = jnp.sum(y, axis=1, keepdims=True) * (1.0 / m)      # (C_out, 1)
    cent = y - mean
    var = jnp.sum(cent * cent, axis=1, keepdims=True) * (1.0 / m)
    out = cent * (g_ref[...] * lax.rsqrt(var + eps)) + bt_ref[...]
    if use_relu:
        out = jnp.maximum(out, 0.0)
    o_ref[...] = out                                          # single unmasked store


@functools.partial(jax.jit, static_argnames=("stride", "padding", "use_relu", "eps"))
def conv_reg_forward(x, w, b, gamma, beta, *, stride, padding,
                     use_relu=True, eps=1e-5):
    n, c_in, h, wsp = x.shape
    c_out, c_in2, kh, kw = w.shape
    assert c_in2 == c_in
    assert stride == 2 and kh == 3 and kw == 3, "only the s_H == 2*t_H branch"

    hp, wp = h + 2 * padding, wsp + 2 * padding
    oh = (hp - kh) // stride + 1
    ow = (wp - kw) // stride + 1
    m = n * oh * ow
    assert hp % 2 == 0 and wp % 2 == 0
    assert oh + (kh - 1) // 2 <= hp // 2 and ow + (kw - 1) // 2 <= wp // 2

    # Host prep (one small fused XLA op chain): pad + stride-2 phase split.
    # xph[2*ph_h + ph_w, n, hh, ww, c] = x_padded[n, c, 2*hh + ph_h, 2*ww + ph_w]
    xp = jnp.pad(x, ((0, 0), (0, 0), (padding, padding), (padding, padding)))
    xph = (xp.transpose(0, 2, 3, 1)                       # (N, Hp, Wp, C)  NHWC
             .reshape(n, hp // 2, 2, wp // 2, 2, c_in)
             .transpose(2, 4, 0, 1, 3, 5)                 # (ph_h, ph_w, N, hh, ww, C)
             .reshape(4, n, hp // 2, wp // 2, c_in))
    # Weight as (tap, C_out, C_in) so each tap is a ready (8, 4) matmul operand.
    wt = w.transpose(2, 3, 0, 1).reshape(kh * kw, c_out, c_in)

    kernel = functools.partial(
        _conv_bn_relu_kernel, n=n, oh=oh, ow=ow, c_in=c_in, kh=kh, kw=kw,
        use_relu=use_relu, eps=eps)

    # Single grid-less pallas_call: all operands fit in VMEM as whole blocks.
    out_t = pl.pallas_call(
        kernel,
        out_shape=jax.ShapeDtypeStruct((c_out, m), jnp.float32),
    )(xph, wt, b.reshape(c_out, 1), gamma.reshape(c_out, 1), beta.reshape(c_out, 1))

    # (C_out, M) -> (C_out, N, OH, OW) -> NCHW : one tiny 4 KB transpose.
    return out_t.reshape(c_out, n, oh, ow).transpose(1, 0, 2, 3)


if __name__ == "__main__":
    key = jax.random.PRNGKey(0)
    k_x, k_w, k_b = jax.random.split(key, 3)

    # s_shape = (2, 4, 16, 16), t_shape = (2, 8, 8, 8) -> stride-2 3x3 conv branch
    N, s_C, s_H, s_W = 2, 4, 16, 16
    t_C, t_H, t_W = 8, 8, 8

    x = jax.random.normal(k_x, (N, s_C, s_H, s_W), jnp.float32)
    fan_in = s_C * 3 * 3
    bound = 1.0 / (fan_in ** 0.5)
    w = jax.random.uniform(k_w, (t_C, s_C, 3, 3), jnp.float32, -bound, bound)
    b = jax.random.uniform(k_b, (t_C,), jnp.float32, -bound, bound)
    gamma = jnp.ones((t_C,), jnp.float32)   # BatchNorm2d default weight init
    beta = jnp.zeros((t_C,), jnp.float32)   # BatchNorm2d default bias init

    out = conv_reg_forward(x, w, b, gamma, beta, stride=2, padding=1, use_relu=True)
    out = jax.block_until_ready(out)
    assert out.shape == (N, t_C, t_H, t_W), out.shape

    # Pure-JAX reference (conv -> training-mode BN -> ReLU).
    y_ref = lax.conv_general_dilated(
        x, w, window_strides=(2, 2), padding=((1, 1), (1, 1)),
        dimension_numbers=("NCHW", "OIHW", "NCHW")) + b.reshape(1, -1, 1, 1)
    mu = y_ref.mean(axis=(0, 2, 3), keepdims=True)
    var = ((y_ref - mu) ** 2).mean(axis=(0, 2, 3), keepdims=True)
    ref = (y_ref - mu) * lax.rsqrt(var + 1e-5)
    ref = ref * gamma.reshape(1, -1, 1, 1) + beta.reshape(1, -1, 1, 1)
    ref = jnp.maximum(ref, 0.0)

    err = float(jnp.max(jnp.abs(out - ref)))
    assert jnp.allclose(out, ref, atol=2e-2, rtol=2e-2), err
    print("KERNEL_OK")
</pallas_src>

<mosaic_0001>
module attributes {stable_mosaic.version = 11 : i64} {
  func.func @_conv_bn_relu_kernel(%arg0: memref<4x2x9x9x4xf32, #tpu.memory_space<vmem>>, %arg1: memref<9x8x4xf32, #tpu.memory_space<vmem>>, %arg2: memref<8x1xf32, #tpu.memory_space<vmem>>, %arg3: memref<8x1xf32, #tpu.memory_space<vmem>>, %arg4: memref<8x1xf32, #tpu.memory_space<vmem>>, %arg5: memref<8x128xf32, #tpu.memory_space<vmem>>) attributes {dimension_semantics = [], scalar_prefetch = 0 : i64, scratch_operands = 0 : i64, tpu.core_type = #tpu.core_type<tc>} {
    %cst = arith.constant 0.000000e+00 : f32
    %0 = vector.broadcast %cst : f32 to vector<8x128xf32>
    %c0 = arith.constant 0 : index
    %c0_0 = arith.constant 0 : index
    %c0_1 = arith.constant 0 : index
    %c0_2 = arith.constant 0 : index
    %c0_3 = arith.constant 0 : index
    %1 = vector.load %arg0[%c0, %c0_0, %c0_1, %c0_2, %c0_3] : memref<4x2x9x9x4xf32, #tpu.memory_space<vmem>>, vector<1x2x9x9x4xf32>
    %2 = vector.shape_cast %1 : vector<1x2x9x9x4xf32> to vector<2x9x9x4xf32>
    %3 = vector.extract_strided_slice %2 {offsets = [0, 0, 0, 0], sizes = [2, 8, 8, 4], strides = [1, 1, 1, 1]} : vector<2x9x9x4xf32> to vector<2x8x8x4xf32>
    %4 = vector.shape_cast %3 : vector<2x8x8x4xf32> to vector<128x4xf32>
    %c0_4 = arith.constant 0 : index
    %c0_5 = arith.constant 0 : index
    %c0_6 = arith.constant 0 : index
    %5 = vector.load %arg1[%c0_4, %c0_5, %c0_6] : memref<9x8x4xf32, #tpu.memory_space<vmem>>, vector<1x8x4xf32>
    %6 = vector.shape_cast %5 : vector<1x8x4xf32> to vector<8x4xf32>
    %cst_7 = arith.constant dense<0.000000e+00> : vector<8x128xf32>
    %7 = tpu.matmul %6, %4, %cst_7 {dimension_numbers = #tpu.dot_dimension_numbers<[1], [1], [0], [0], [0, 0, 1, 0], [], []>} : vector<8x4xf32>, vector<128x4xf32>, vector<8x128xf32> -> vector<8x128xf32>
    %8 = arith.addf %0, %7 : vector<8x128xf32>
    %c1 = arith.constant 1 : index
    %c0_8 = arith.constant 0 : index
    %c0_9 = arith.constant 0 : index
    %c0_10 = arith.constant 0 : index
    %c0_11 = arith.constant 0 : index
    %9 = vector.load %arg0[%c1, %c0_8, %c0_9, %c0_10, %c0_11] : memref<4x2x9x9x4xf32, #tpu.memory_space<vmem>>, vector<1x2x9x9x4xf32>
    %10 = vector.shape_cast %9 : vector<1x2x9x9x4xf32> to vector<2x9x9x4xf32>
    %11 = vector.extract_strided_slice %10 {offsets = [0, 0, 0, 0], sizes = [2, 8, 8, 4], strides = [1, 1, 1, 1]} : vector<2x9x9x4xf32> to vector<2x8x8x4xf32>
    %12 = vector.shape_cast %11 : vector<2x8x8x4xf32> to vector<128x4xf32>
    %c1_12 = arith.constant 1 : index
    %c0_13 = arith.constant 0 : index
    %c0_14 = arith.constant 0 : index
    %13 = vector.load %arg1[%c1_12, %c0_13, %c0_14] : memref<9x8x4xf32, #tpu.memory_space<vmem>>, vector<1x8x4xf32>
    %14 = vector.shape_cast %13 : vector<1x8x4xf32> to vector<8x4xf32>
    %cst_15 = arith.constant dense<0.000000e+00> : vector<8x128xf32>
    %15 = tpu.matmul %14, %12, %cst_15 {dimension_numbers = #tpu.dot_dimension_numbers<[1], [1], [0], [0], [0, 0, 1, 0], [], []>} : vector<8x4xf32>, vector<128x4xf32>, vector<8x128xf32> -> vector<8x128xf32>
    %16 = arith.addf %8, %15 : vector<8x128xf32>
    %c0_16 = arith.constant 0 : index
    %c0_17 = arith.constant 0 : index
    %c0_18 = arith.constant 0 : index
    %c0_19 = arith.constant 0 : index
    %c0_20 = arith.constant 0 : index
    %17 = vector.load %arg0[%c0_16, %c0_17, %c0_18, %c0_19, %c0_20] : memref<4x2x9x9x4xf32, #tpu.memory_space<vmem>>, vector<1x2x9x9x4xf32>
    %18 = vector.shape_cast %17 : vector<1x2x9x9x4xf32> to vector<2x9x9x4xf32>
    %19 = vector.extract_strided_slice %18 {offsets = [0, 0, 1, 0], sizes = [2, 8, 8, 4], strides = [1, 1, 1, 1]} : vector<2x9x9x4xf32> to vector<2x8x8x4xf32>
    %20 = vector.shape_cast %19 : vector<2x8x8x4xf32> to vector<128x4xf32>
    %c2 = arith.constant 2 : index
    %c0_21 = arith.constant 0 : index
    %c0_22 = arith.constant 0 : index
    %21 = vector.load %arg1[%c2, %c0_21, %c0_22] : memref<9x8x4xf32, #tpu.memory_space<vmem>>, vector<1x8x4xf32>
    %22 = vector.shape_cast %21 : vector<1x8x4xf32> to vector<8x4xf32>
    %cst_23 = arith.constant dense<0.000000e+00> : vector<8x128xf32>
    %23 = tpu.matmul %22, %20, %cst_23 {dimension_numbers = #tpu.dot_dimension_numbers<[1], [1], [0], [0], [0, 0, 1, 0], [], []>} : vector<8x4xf32>, vector<128x4xf32>, vector<8x128xf32> -> vector<8x128xf32>
    %24 = arith.addf %16, %23 : vector<8x128xf32>
    %c2_24 = arith.constant 2 : index
    %c0_25 = arith.constant 0 : index
    %c0_26 = arith.constant 0 : index
    %c0_27 = arith.constant 0 : index
    %c0_28 = arith.constant 0 : index
    %25 = vector.load %arg0[%c2_24, %c0_25, %c0_26, %c0_27, %c0_28] : memref<4x2x9x9x4xf32, #tpu.memory_space<vmem>>, vector<1x2x9x9x4xf32>
    %26 = vector.shape_cast %25 : vector<1x2x9x9x4xf32> to vector<2x9x9x4xf32>
    %27 = vector.extract_strided_slice %26 {offsets = [0, 0, 0, 0], sizes = [2, 8, 8, 4], strides = [1, 1, 1, 1]} : vector<2x9x9x4xf32> to vector<2x8x8x4xf32>
    %28 = vector.shape_cast %27 : vector<2x8x8x4xf32> to vector<128x4xf32>
    %c3 = arith.constant 3 : index
    %c0_29 = arith.constant 0 : index
    %c0_30 = arith.constant 0 : index
    %29 = vector.load %arg1[%c3, %c0_29, %c0_30] : memref<9x8x4xf32, #tpu.memory_space<vmem>>, vector<1x8x4xf32>
    %30 = vector.shape_cast %29 : vector<1x8x4xf32> to vector<8x4xf32>
    %cst_31 = arith.constant dense<0.000000e+00> : vector<8x128xf32>
    %31 = tpu.matmul %30, %28, %cst_31 {dimension_numbers = #tpu.dot_dimension_numbers<[1], [1], [0], [0], [0, 0, 1, 0], [], []>} : vector<8x4xf32>, vector<128x4xf32>, vector<8x128xf32> -> vector<8x128xf32>
    %32 = arith.addf %24, %31 : vector<8x128xf32>
    %c3_32 = arith.constant 3 : index
    %c0_33 = arith.constant 0 : index
    %c0_34 = arith.constant 0 : index
    %c0_35 = arith.constant 0 : index
    %c0_36 = arith.constant 0 : index
    %33 = vector.load %arg0[%c3_32, %c0_33, %c0_34, %c0_35, %c0_36] : memref<4x2x9x9x4xf32, #tpu.memory_space<vmem>>, vector<1x2x9x9x4xf32>
    %34 = vector.shape_cast %33 : vector<1x2x9x9x4xf32> to vector<2x9x9x4xf32>
    %35 = vector.extract_strided_slice %34 {offsets = [0, 0, 0, 0], sizes = [2, 8, 8, 4], strides = [1, 1, 1, 1]} : vector<2x9x9x4xf32> to vector<2x8x8x4xf32>
    %36 = vector.shape_cast %35 : vector<2x8x8x4xf32> to vector<128x4xf32>
    %c4 = arith.constant 4 : index
    %c0_37 = arith.constant 0 : index
    %c0_38 = arith.constant 0 : index
    %37 = vector.load %arg1[%c4, %c0_37, %c0_38] : memref<9x8x4xf32, #tpu.memory_space<vmem>>, vector<1x8x4xf32>
    %38 = vector.shape_cast %37 : vector<1x8x4xf32> to vector<8x4xf32>
    %cst_39 = arith.constant dense<0.000000e+00> : vector<8x128xf32>
    %39 = tpu.matmul %38, %36, %cst_39 {dimension_numbers = #tpu.dot_dimension_numbers<[1], [1], [0], [0], [0, 0, 1, 0], [], []>} : vector<8x4xf32>, vector<128x4xf32>, vector<8x128xf32> -> vector<8x128xf32>
    %40 = arith.addf %32, %39 : vector<8x128xf32>
    %c2_40 = arith.constant 2 : index
    %c0_41 = arith.constant 0 : index
    %c0_42 = arith.constant 0 : index
    %c0_43 = arith.constant 0 : index
    %c0_44 = arith.constant 0 : index
    %41 = vector.load %arg0[%c2_40, %c0_41, %c0_42, %c0_43, %c0_44] : memref<4x2x9x9x4xf32, #tpu.memory_space<vmem>>, vector<1x2x9x9x4xf32>
    %42 = vector.shape_cast %41 : vector<1x2x9x9x4xf32> to vector<2x9x9x4xf32>
    %43 = vector.extract_strided_slice %42 {offsets = [0, 0, 1, 0], sizes = [2, 8, 8, 4], strides = [1, 1, 1, 1]} : vector<2x9x9x4xf32> to vector<2x8x8x4xf32>
    %44 = vector.shape_cast %43 : vector<2x8x8x4xf32> to vector<128x4xf32>
    %c5 = arith.constant 5 : index
    %c0_45 = arith.constant 0 : index
    %c0_46 = arith.constant 0 : index
    %45 = vector.load %arg1[%c5, %c0_45, %c0_46] : memref<9x8x4xf32, #tpu.memory_space<vmem>>, vector<1x8x4xf32>
    %46 = vector.shape_cast %45 : vector<1x8x4xf32> to vector<8x4xf32>
    %cst_47 = arith.constant dense<0.000000e+00> : vector<8x128xf32>
    %47 = tpu.matmul %46, %44, %cst_47 {dimension_numbers = #tpu.dot_dimension_numbers<[1], [1], [0], [0], [0, 0, 1, 0], [], []>} : vector<8x4xf32>, vector<128x4xf32>, vector<8x128xf32> -> vector<8x128xf32>
    %48 = arith.addf %40, %47 : vector<8x128xf32>
    %c0_48 = arith.constant 0 : index
    %c0_49 = arith.constant 0 : index
    %c0_50 = arith.constant 0 : index
    %c0_51 = arith.constant 0 : index
    %c0_52 = arith.constant 0 : index
    %49 = vector.load %arg0[%c0_48, %c0_49, %c0_50, %c0_51, %c0_52] : memref<4x2x9x9x4xf32, #tpu.memory_space<vmem>>, vector<1x2x9x9x4xf32>
    %50 = vector.shape_cast %49 : vector<1x2x9x9x4xf32> to vector<2x9x9x4xf32>
    %51 = vector.extract_strided_slice %50 {offsets = [0, 1, 0, 0], sizes = [2, 8, 8, 4], strides = [1, 1, 1, 1]} : vector<2x9x9x4xf32> to vector<2x8x8x4xf32>
    %52 = vector.shape_cast %51 : vector<2x8x8x4xf32> to vector<128x4xf32>
    %c6 = arith.constant 6 : index
    %c0_53 = arith.constant 0 : index
    %c0_54 = arith.constant 0 : index
    %53 = vector.load %arg1[%c6, %c0_53, %c0_54] : memref<9x8x4xf32, #tpu.memory_space<vmem>>, vector<1x8x4xf32>
    %54 = vector.shape_cast %53 : vector<1x8x4xf32> to vector<8x4xf32>
    %cst_55 = arith.constant dense<0.000000e+00> : vector<8x128xf32>
    %55 = tpu.matmul %54, %52, %cst_55 {dimension_numbers = #tpu.dot_dimension_numbers<[1], [1], [0], [0], [0, 0, 1, 0], [], []>} : vector<8x4xf32>, vector<128x4xf32>, vector<8x128xf32> -> vector<8x128xf32>
    %56 = arith.addf %48, %55 : vector<8x128xf32>
    %c1_56 = arith.constant 1 : index
    %c0_57 = arith.constant 0 : index
    %c0_58 = arith.constant 0 : index
    %c0_59 = arith.constant 0 : index
    %c0_60 = arith.constant 0 : index
    %57 = vector.load %arg0[%c1_56, %c0_57, %c0_58, %c0_59, %c0_60] : memref<4x2x9x9x4xf32, #tpu.memory_space<vmem>>, vector<1x2x9x9x4xf32>
    %58 = vector.shape_cast %57 : vector<1x2x9x9x4xf32> to vector<2x9x9x4xf32>
    %59 = vector.extract_strided_slice %58 {offsets = [0, 1, 0, 0], sizes = [2, 8, 8, 4], strides = [1, 1, 1, 1]} : vector<2x9x9x4xf32> to vector<2x8x8x4xf32>
    %60 = vector.shape_cast %59 : vector<2x8x8x4xf32> to vector<128x4xf32>
    %c7 = arith.constant 7 : index
    %c0_61 = arith.constant 0 : index
    %c0_62 = arith.constant 0 : index
    %61 = vector.load %arg1[%c7, %c0_61, %c0_62] : memref<9x8x4xf32, #tpu.memory_space<vmem>>, vector<1x8x4xf32>
    %62 = vector.shape_cast %61 : vector<1x8x4xf32> to vector<8x4xf32>
    %cst_63 = arith.constant dense<0.000000e+00> : vector<8x128xf32>
    %63 = tpu.matmul %62, %60, %cst_63 {dimension_numbers = #tpu.dot_dimension_numbers<[1], [1], [0], [0], [0, 0, 1, 0], [], []>} : vector<8x4xf32>, vector<128x4xf32>, vector<8x128xf32> -> vector<8x128xf32>
    %64 = arith.addf %56, %63 : vector<8x128xf32>
    %c0_64 = arith.constant 0 : index
    %c0_65 = arith.constant 0 : index
    %c0_66 = arith.constant 0 : index
    %c0_67 = arith.constant 0 : index
    %c0_68 = arith.constant 0 : index
    %65 = vector.load %arg0[%c0_64, %c0_65, %c0_66, %c0_67, %c0_68] : memref<4x2x9x9x4xf32, #tpu.memory_space<vmem>>, vector<1x2x9x9x4xf32>
    %66 = vector.shape_cast %65 : vector<1x2x9x9x4xf32> to vector<2x9x9x4xf32>
    %67 = vector.extract_strided_slice %66 {offsets = [0, 1, 1, 0], sizes = [2, 8, 8, 4], strides = [1, 1, 1, 1]} : vector<2x9x9x4xf32> to vector<2x8x8x4xf32>
    %68 = vector.shape_cast %67 : vector<2x8x8x4xf32> to vector<128x4xf32>
    %c8 = arith.constant 8 : index
    %c0_69 = arith.constant 0 : index
    %c0_70 = arith.constant 0 : index
    %69 = vector.load %arg1[%c8, %c0_69, %c0_70] : memref<9x8x4xf32, #tpu.memory_space<vmem>>, vector<1x8x4xf32>
    %70 = vector.shape_cast %69 : vector<1x8x4xf32> to vector<8x4xf32>
    %cst_71 = arith.constant dense<0.000000e+00> : vector<8x128xf32>
    %71 = tpu.matmul %70, %68, %cst_71 {dimension_numbers = #tpu.dot_dimension_numbers<[1], [1], [0], [0], [0, 0, 1, 0], [], []>} : vector<8x4xf32>, vector<128x4xf32>, vector<8x128xf32> -> vector<8x128xf32>
    %72 = arith.addf %64, %71 : vector<8x128xf32>
    %c0_72 = arith.constant 0 : index
    %c0_73 = arith.constant 0 : index
    %73 = vector.load %arg2[%c0_72, %c0_73] : memref<8x1xf32, #tpu.memory_space<vmem>>, vector<8x1xf32>
    %74 = vector.broadcast %73 : vector<8x1xf32> to vector<8x128xf32>
    %75 = arith.addf %72, %74 : vector<8x128xf32>
    %cst_74 = arith.constant dense<0.000000e+00> : vector<8xf32>
    %76 = vector.multi_reduction <add>, %75, %cst_74 [1] : vector<8x128xf32> to vector<8xf32>
    %77 = vector.shape_cast %76 : vector<8xf32> to vector<8x1xf32>
    %cst_75 = arith.constant 7.812500e-03 : f32
    %78 = vector.broadcast %cst_75 : f32 to vector<8x1xf32>
    %79 = arith.mulf %77, %78 : vector<8x1xf32>
    %80 = vector.broadcast %79 : vector<8x1xf32> to vector<8x128xf32>
    %81 = arith.subf %75, %80 : vector<8x128xf32>
    %82 = arith.mulf %81, %81 : vector<8x128xf32>
    %cst_76 = arith.constant dense<0.000000e+00> : vector<8xf32>
    %83 = vector.multi_reduction <add>, %82, %cst_76 [1] : vector<8x128xf32> to vector<8xf32>
    %84 = vector.shape_cast %83 : vector<8xf32> to vector<8x1xf32>
    %cst_77 = arith.constant 7.812500e-03 : f32
    %85 = vector.broadcast %cst_77 : f32 to vector<8x1xf32>
    %86 = arith.mulf %84, %85 : vector<8x1xf32>
    %c0_78 = arith.constant 0 : index
    %c0_79 = arith.constant 0 : index
    %87 = vector.load %arg3[%c0_78, %c0_79] : memref<8x1xf32, #tpu.memory_space<vmem>>, vector<8x1xf32>
    %cst_80 = arith.constant 9.99999974E-6 : f32
    %88 = vector.broadcast %cst_80 : f32 to vector<8x1xf32>
    %89 = arith.addf %86, %88 : vector<8x1xf32>
    %90 = math.rsqrt %89 : vector<8x1xf32>
    %91 = arith.mulf %87, %90 : vector<8x1xf32>
    %92 = vector.broadcast %91 : vector<8x1xf32> to vector<8x128xf32>
    %93 = arith.mulf %81, %92 : vector<8x128xf32>
    %c0_81 = arith.constant 0 : index
    %c0_82 = arith.constant 0 : index
    %94 = vector.load %arg4[%c0_81, %c0_82] : memref<8x1xf32, #tpu.memory_space<vmem>>, vector<8x1xf32>
    %95 = vector.broadcast %94 : vector<8x1xf32> to vector<8x128xf32>
    %96 = arith.addf %93, %95 : vector<8x128xf32>
    %cst_83 = arith.constant 0.000000e+00 : f32
    %97 = vector.broadcast %cst_83 : f32 to vector<8x128xf32>
    %98 = arith.maximumf %96, %97 : vector<8x128xf32>
    %c0_84 = arith.constant 0 : index
    %c0_85 = arith.constant 0 : index
    %99 = vector.load %arg5[%c0_84, %c0_85] : memref<8x128xf32, #tpu.memory_space<vmem>>, vector<8x128xf32>
    tpu.vector_store %arg5[%c0_84, %c0_85], %98 {strides = array<i32>} : memref<8x128xf32, #tpu.memory_space<vmem>>, vector<8x128xf32>,
    return
  }
}

</mosaic_0001>

<llo_original>
// kernel: conv_reg_forward.1
$region0: #{conv_reg_forward.1}
  #allocation0 [shape = 'u32[]', space=smem, size = 0x4, offset = 0x4, fixed_abs, tag = 'smem constant byte address 0x4 - core index']
  #allocation1 [shape = 'u32[144,128]{1,0:T(1,128)}', space=vmem, size = 0x12000, scoped, tag = 'internal scratch']
  %s0 = inlined_call_operand.vmem [shape: f32[4,2,9,9,4], index: 0, kind: input, shape index: {}]
  %s1 = inlined_call_operand.vmem [shape: f32[9,8,4], index: 1, kind: input, shape index: {}]
  %s2 = inlined_call_operand.vmem [shape: f32[8,1], index: 2, kind: input, shape index: {}]
  %s3 = inlined_call_operand.vmem [shape: f32[8,1], index: 3, kind: input, shape index: {}]
  %s4 = inlined_call_operand.vmem [shape: f32[8,1], index: 4, kind: input, shape index: {}]
  %s5 = inlined_call_operand.vmem [shape: f32[8,128], index: 5, kind: output, shape index: {}]
  %s6 = sld [smem:[#allocation0]]
  $region30: #{conv_reg_forward.1} parent=0
    _
  %s8 = ssub.s32 1, %s6
  %s9 = scalar_select 0, %s8, %s6
  // Predicated region
  $region2: #{conv_reg_forward.1} parent=0 // pred_check
    _
  $region3: #{conv_reg_forward.1} parent=0 // pred_check_branch
    %11 = sbr.rel (0) target = $region5
  $region4: #{conv_reg_forward.1} parent=0 // pred_region
    _
  $region5: #{conv_reg_forward.1} parent=0 // pred_fallthru
    _
  // Predicated region
  $region6: #{conv_reg_forward.1} parent=0 // pred_check
    _
  $region7: #{conv_reg_forward.1} parent=0 // pred_check_branch
    %13 = sbr.rel (0) target = $region9
  $region8: #{conv_reg_forward.1} parent=0 // pred_region
    _
  $region9: #{conv_reg_forward.1} parent=0 // pred_fallthru
    _
  // Predicated region
  $region10: #{conv_reg_forward.1} parent=0 // pred_check
    _
  $region11: #{conv_reg_forward.1} parent=0 // pred_check_branch
    %15 = sbr.rel (0) target = $region13
  $region12: #{conv_reg_forward.1} parent=0 // pred_region
    _
  $region13: #{conv_reg_forward.1} parent=0 // pred_fallthru
    _
  // Predicated region
  $region14: #{conv_reg_forward.1} parent=0 // pred_check
    _
  $region15: #{conv_reg_forward.1} parent=0 // pred_check_branch
    %17 = sbr.rel (0) target = $region17
  $region16: #{conv_reg_forward.1} parent=0 // pred_region
    _
  $region17: #{conv_reg_forward.1} parent=0 // pred_fallthru
    _
  // Predicated region
  $region18: #{conv_reg_forward.1} parent=0 // pred_check
    _
  $region19: #{conv_reg_forward.1} parent=0 // pred_check_branch
    %19 = sbr.rel (0) target = $region21
  $region20: #{conv_reg_forward.1} parent=0 // pred_region
    _
  $region21: #{conv_reg_forward.1} parent=0 // pred_fallthru
    _
  %v20 = vld [vmem:[%s0] sm:$0xff]
  %v21 = vld [vmem:[%s0 + $0x8] sm:$0x1]
  %v22 = vld [vmem:[%s0 + $0x10] sm:$0xff]
  %v23 = vld [vmem:[%s0 + $0x18] sm:$0x1]
  %v24 = vld [vmem:[%s0 + $0x20] sm:$0xff]
  %v25 = vld [vmem:[%s0 + $0x28] sm:$0x1]
  %v26 = vld [vmem:[%s0 + $0x30] sm:$0xff]
  %v27 = vld [vmem:[%s0 + $0x38] sm:$0x1]
  %v28 = vld [vmem:[%s0 + $0x40] sm:$0xff]
  %v29 = vld [vmem:[%s0 + $0x48] sm:$0x1]
  %v30 = vld [vmem:[%s0 + $0x50] sm:$0xff]
  %v31 = vld [vmem:[%s0 + $0x58] sm:$0x1]
  %v32 = vld [vmem:[%s0 + $0x60] sm:$0xff]
  %v33 = vld [vmem:[%s0 + $0x68] sm:$0x1]
  %v34 = vld [vmem:[%s0 + $0x70] sm:$0xff]
  %v35 = vld [vmem:[%s0 + $0x78] sm:$0x1]
  %v36 = vld [vmem:[%s0 + $0x80] sm:$0xff]
  %v37 = vld [vmem:[%s0 + $0x88] sm:$0x1]
  %v38 = vld [vmem:[%s0 + $0x90] sm:$0xff]
  %v39 = vld [vmem:[%s0 + $0x98] sm:$0x1]
  %v40 = vld [vmem:[%s0 + $0xa0] sm:$0xff]
  %v41 = vld [vmem:[%s0 + $0xa8] sm:$0x1]
  %v42 = vld [vmem:[%s0 + $0xb0] sm:$0xff]
  %v43 = vld [vmem:[%s0 + $0xb8] sm:$0x1]
  %v44 = vld [vmem:[%s0 + $0xc0] sm:$0xff]
  %v45 = vld [vmem:[%s0 + $0xc8] sm:$0x1]
  %v46 = vld [vmem:[%s0 + $0xd0] sm:$0xff]
  %v47 = vld [vmem:[%s0 + $0xd8] sm:$0x1]
  %v48 = vld [vmem:[%s0 + $0xe0] sm:$0xff]
  %v49 = vld [vmem:[%s0 + $0xe8] sm:$0x1]
  %v50 = vld [vmem:[%s0 + $0xf0] sm:$0xff]
  %v51 = vld [vmem:[%s0 + $0xf8] sm:$0x1]
  %v52 = vld [vmem:[%s0 + $0x100] sm:$0xff]
  %v53 = vld [vmem:[%s0 + $0x108] sm:$0x1]
  %v54 = vld [vmem:[%s0 + $0x110] sm:$0xff]
  %v55 = vld [vmem:[%s0 + $0x118] sm:$0x1]
  %v56 = vld [vmem:[%s1] sm:$0xff]
  %s57 = scalar_lea.vmem %s0, 288
  %v58 = vld [vmem:[%s57] sm:$0xff]
  %v59 = vld [vmem:[%s57 + $0x10] sm:$0xff]
  %v60 = vld [vmem:[%s57 + $0x20] sm:$0xff]
  %v61 = vld [vmem:[%s57 + $0x30] sm:$0xff]
  %v62 = vld [vmem:[%s57 + $0x40] sm:$0xff]
  %v63 = vld [vmem:[%s57 + $0x50] sm:$0xff]
  %v64 = vld [vmem:[%s57 + $0x60] sm:$0xff]
  %v65 = vld [vmem:[%s57 + $0x70] sm:$0xff]
  %v66 = vld [vmem:[%s57 + $0x80] sm:$0xff]
  %v67 = vld [vmem:[%s57 + $0x90] sm:$0xff]
  %v68 = vld [vmem:[%s57 + $0xa0] sm:$0xff]
  %v69 = vld [vmem:[%s57 + $0xb0] sm:$0xff]
  %v70 = vld [vmem:[%s57 + $0xc0] sm:$0xff]
  %v71 = vld [vmem:[%s57 + $0xd0] sm:$0xff]
  %v72 = vld [vmem:[%s57 + $0xe0] sm:$0xff]
  %v73 = vld [vmem:[%s57 + $0xf0] sm:$0xff]
  %v74 = vld [vmem:[%s57 + $0x100] sm:$0xff]
  %v75 = vld [vmem:[%s57 + $0x110] sm:$0xff]
  %s76 = scalar_lea.vmem %s1, 8
  %v77 = vld [vmem:[%s76] sm:$0xff]
  %vm78 = vcmask 31744
  %v80 = vsel %vm78, %v77, 0
  %v83 = vsel %vm78, %v58, 0
  %v86 = vsel %vm78, %v59, 0
  %v89 = vsel %vm78, %v60, 0
  %v92 = vsel %vm78, %v61, 0
  %v95 = vsel %vm78, %v62, 0
  %v98 = vsel %vm78, %v63, 0
  %v101 = vsel %vm78, %v64, 0
  %v104 = vsel %vm78, %v65, 0
  %v107 = vsel %vm78, %v67, 0
  %v110 = vsel %vm78, %v68, 0
  %v113 = vsel %vm78, %v69, 0
  %v116 = vsel %vm78, %v70, 0
  %v119 = vsel %vm78, %v71, 0
  %v122 = vsel %vm78, %v72, 0
  %v125 = vsel %vm78, %v73, 0
  %v128 = vsel %vm78, %v74, 0
  %130 = vmatprep.subr.mxu0 0.0
  %131 = vmatpush1.xpose.msra.mxu0 %v83
  %132 = vmatprep.subr.mxu0 0.0
  %133 = vmatpush1.xpose.msra.mxu0 %v86
  %134 = vmatprep.subr.mxu0 0.0
  %135 = vmatpush1.xpose.msra.mxu0 %v89
  %136 = vmatprep.subr.mxu0 0.0
  %137 = vmatpush1.xpose.msra.mxu0 %v92
  %138 = vmatprep.subr.mxu0 0.0
  %139 = vmatpush1.xpose.msra.mxu0 %v95
  %140 = vmatprep.subr.mxu0 0.0
  %141 = vmatpush1.xpose.msra.mxu0 %v98
  %142 = vmatprep.subr.mxu0 0.0
  %143 = vmatpush1.xpose.msra.mxu0 %v101
  %144 = vmatprep.subr.mxu0 0.0
  %145 = vmatpush1.xpose.msra.mxu0 %v104
  %146 = vmatprep.subr.mxu0 0.0
  %147 = vmatpush1.xpose.msra.mxu0 %v107
  %148 = vmatprep.subr.mxu0 0.0
  %149 = vmatpush1.xpose.msra.mxu0 %v110
  %150 = vmatprep.subr.mxu0 0.0
  %151 = vmatpush1.xpose.msra.mxu0 %v113
  %152 = vmatprep.subr.mxu0 0.0
  %153 = vmatpush1.xpose.msra.mxu0 %v116
  %154 = vmatprep.subr.mxu0 0.0
  %155 = vmatpush1.xpose.msra.mxu0 %v119
  %156 = vmatprep.subr.mxu0 0.0
  %157 = vmatpush1.xpose.msra.mxu0 %v122
  %158 = vmatprep.subr.mxu0 0.0
  %159 = vmatpush1.xpose.msra.mxu0 %v125
  %160 = vmatprep.subr.mxu0 0.0
  %161 = vmatpush1.xpose.msra.mxu0 %v128
  %162 = vmatprep.subr.mxu0 0.0
  %163 = vmatpush1.xpose.msra.mxu0 0.0
  %164 = vmatprep.subr.mxu0 0.0
  %165 = vmatpush1.xpose.msra.mxu0 0.0
  %166 = vmatprep.subr.mxu0 0.0
  %167 = vmatpush1.xpose.msra.mxu0 0.0
  %168 = vmatprep.subr.mxu0 0.0
  %169 = vmatpush1.xpose.msra.mxu0 0.0
  %170 = vmatprep.subr.mxu0 0.0
  %171 = vmatpush1.xpose.msra.mxu0 0.0
  %172 = vmatprep.subr.mxu0 0.0
  %173 = vmatpush1.xpose.msra.mxu0 0.0
  %174 = vmatprep.subr.mxu0 0.0
  %175 = vmatpush1.xpose.msra.mxu0 0.0
  %176 = vmatprep.subr.mxu0 0.0
  %177 = vmatpush1.xpose.msra.mxu0 0.0
  %178 = vmatprep.subr.mxu0 0.0
  %179 = vmatpush1.xpose.msra.mxu0 0.0
  %180 = vmatprep.subr.mxu0 0.0
  %181 = vmatpush1.xpose.msra.mxu0 0.0
  %182 = vmatprep.subr.mxu0 0.0
  %183 = vmatpush1.xpose.msra.mxu0 0.0
  %184 = vmatprep.subr.mxu0 0.0
  %185 = vmatpush1.xpose.msra.mxu0 0.0
  %186 = vmatprep.subr.mxu0 0.0
  %187 = vmatpush1.xpose.msra.mxu0 0.0
  %188 = vmatprep.subr.mxu0 0.0
  %189 = vmatpush1.xpose.msra.mxu0 0.0
  %190 = vmatprep.subr.mxu0 0.0
  %191 = vmatpush1.xpose.msra.mxu0 0.0
  %192 = vmatprep.subr.mxu0 0.0
  %193 = vmatpush1.xpose.msra.mxu0 0.0
  %194 = vmatprep.mubr.f32.mxu0 0.0
  %195 = vmatmul.mubr.f32.gmra.mrb[0].mxu0 %v80
  %v196 = vpop.f32.mrb[0].mxu0
  %v197 = vadd.f32 0.0, %v196
  %v198 = vpop.f32.mrb[0].mxu0
  %199 = vdwg.mxu0
  %v201 = vsel %vm78, %v56, 0
  %v204 = vsel %vm78, %v20, 0
  %v207 = vsel %vm78, %v22, 0
  %v210 = vsel %vm78, %v24, 0
  %v213 = vsel %vm78, %v26, 0
  %v216 = vsel %vm78, %v28, 0
  %v219 = vsel %vm78, %v30, 0
  %v222 = vsel %vm78, %v32, 0
  %v225 = vsel %vm78, %v34, 0
  %v228 = vsel %vm78, %v38, 0
  %v231 = vsel %vm78, %v40, 0
  %v234 = vsel %vm78, %v42, 0
  %v237 = vsel %vm78, %v44, 0
  %v240 = vsel %vm78, %v46, 0
  %v243 = vsel %vm78, %v48, 0
  %v246 = vsel %vm78, %v50, 0
  %v249 = vsel %vm78, %v52, 0
  %251 = vmatprep.subr.mxu0 0.0
  %252 = vmatpush1.xpose.msra.mxu0 %v204
  %253 = vmatprep.subr.mxu0 0.0
  %254 = vmatpush1.xpose.msra.mxu0 %v207
  %255 = vmatprep.subr.mxu0 0.0
  %256 = vmatpush1.xpose.msra.mxu0 %v210
  %257 = vmatprep.subr.mxu0 0.0
  %258 = vmatpush1.xpose.msra.mxu0 %v213
  %259 = vmatprep.subr.mxu0 0.0
  %260 = vmatpush1.xpose.msra.mxu0 %v216
  %261 = vmatprep.subr.mxu0 0.0
  %262 = vmatpush1.xpose.msra.mxu0 %v219
  %263 = vmatprep.subr.mxu0 0.0
  %264 = vmatpush1.xpose.msra.mxu0 %v222
  %265 = vmatprep.subr.mxu0 0.0
  %266 = vmatpush1.xpose.msra.mxu0 %v225
  %267 = vmatprep.subr.mxu0 0.0
  %268 = vmatpush1.xpose.msra.mxu0 %v228
  %269 = vmatprep.subr.mxu0 0.0
  %270 = vmatpush1.xpose.msra.mxu0 %v231
  %271 = vmatprep.subr.mxu0 0.0
  %272 = vmatpush1.xpose.msra.mxu0 %v234
  %273 = vmatprep.subr.mxu0 0.0
  %274 = vmatpush1.xpose.msra.mxu0 %v237
  %275 = vmatprep.subr.mxu0 0.0
  %276 = vmatpush1.xpose.msra.mxu0 %v240
  %277 = vmatprep.subr.mxu0 0.0
  %278 = vmatpush1.xpose.msra.mxu0 %v243
  %279 = vmatprep.subr.mxu0 0.0
  %280 = vmatpush1.xpose.msra.mxu0 %v246
  %281 = vmatprep.subr.mxu0 0.0
  %282 = vmatpush1.xpose.msra.mxu0 %v249
  %283 = vmatprep.subr.mxu0 0.0
  %284 = vmatpush1.xpose.msra.mxu0 0.0
  %285 = vmatprep.subr.mxu0 0.0
  %286 = vmatpush1.xpose.msra.mxu0 0.0
  %287 = vmatprep.subr.mxu0 0.0
  %288 = vmatpush1.xpose.msra.mxu0 0.0
  %289 = vmatprep.subr.mxu0 0.0
  %290 = vmatpush1.xpose.msra.mxu0 0.0
  %291 = vmatprep.subr.mxu0 0.0
  %292 = vmatpush1.xpose.msra.mxu0 0.0
  %293 = vmatprep.subr.mxu0 0.0
  %294 = vmatpush1.xpose.msra.mxu0 0.0
  %295 = vmatprep.subr.mxu0 0.0
  %296 = vmatpush1.xpose.msra.mxu0 0.0
  %297 = vmatprep.subr.mxu0 0.0
  %298 = vmatpush1.xpose.msra.mxu0 0.0
  %299 = vmatprep.subr.mxu0 0.0
  %300 = vmatpush1.xpose.msra.mxu0 0.0
  %301 = vmatprep.subr.mxu0 0.0
  %302 = vmatpush1.xpose.msra.mxu0 0.0
  %303 = vmatprep.subr.mxu0 0.0
  %304 = vmatpush1.xpose.msra.mxu0 0.0
  %305 = vmatprep.subr.mxu0 0.0
  %306 = vmatpush1.xpose.msra.mxu0 0.0
  %307 = vmatprep.subr.mxu0 0.0
  %308 = vmatpush1.xpose.msra.mxu0 0.0
  %309 = vmatprep.subr.mxu0 0.0
  %310 = vmatpush1.xpose.msra.mxu0 0.0
  %311 = vmatprep.subr.mxu0 0.0
  %312 = vmatpush1.xpose.msra.mxu0 0.0
  %313 = vmatprep.subr.mxu0 0.0
  %314 = vmatpush1.xpose.msra.mxu0 0.0
  %315 = vmatprep.mubr.f32.mxu0 0.0
  %316 = vmatmul.mubr.f32.gmra.mrb[0].mxu0 %v201
  %v317 = vpop.f32.mrb[0].mxu0
  %v318 = vadd.f32 %v197, %v317
  %v319 = vpop.f32.mrb[0].mxu0
  %320 = vdwg.mxu0
  %vm337 = vcmask 1046528
  %v338 = vrot.slane %v20, 1
  %v339 = vrot.slane %v21, 1
  %v340 = vsel %vm337, %v338, %v339
  %v341 = vrot.slane %v22, 1
  %v342 = vrot.slane %v23, 1
  %v343 = vsel %vm337, %v341, %v342
  %v344 = vrot.slane %v24, 1
  %v345 = vrot.slane %v25, 1
  %v346 = vsel %vm337, %v344, %v345
  %v347 = vrot.slane %v26, 1
  %v348 = vrot.slane %v27, 1
  %v349 = vsel %vm337, %v347, %v348
  %v350 = vrot.slane %v28, 1
  %v351 = vrot.slane %v29, 1
  %v352 = vsel %vm337, %v350, %v351
  %v353 = vrot.slane %v30, 1
  %v354 = vrot.slane %v31, 1
  %v355 = vsel %vm337, %v353, %v354
  %v356 = vrot.slane %v32, 1
  %v357 = vrot.slane %v33, 1
  %v358 = vsel %vm337, %v356, %v357
  %v359 = vrot.slane %v34, 1
  %v360 = vrot.slane %v35, 1
  %v361 = vsel %vm337, %v359, %v360
  %v362 = vrot.slane %v38, 1
  %v363 = vrot.slane %v39, 1
  %v364 = vsel %vm337, %v362, %v363
  %v365 = vrot.slane %v40, 1
  %v366 = vrot.slane %v41, 1
  %v367 = vsel %vm337, %v365, %v366
  %v368 = vrot.slane %v42, 1
  %v369 = vrot.slane %v43, 1
  %v370 = vsel %vm337, %v368, %v369
  %v371 = vrot.slane %v44, 1
  %v372 = vrot.slane %v45, 1
  %v373 = vsel %vm337, %v371, %v372
  %v374 = vrot.slane %v46, 1
  %v375 = vrot.slane %v47, 1
  %v376 = vsel %vm337, %v374, %v375
  %v377 = vrot.slane %v48, 1
  %v378 = vrot.slane %v49, 1
  %v379 = vsel %vm337, %v377, %v378
  %v380 = vrot.slane %v50, 1
  %v381 = vrot.slane %v51, 1
  %v382 = vsel %vm337, %v380, %v381
  %v383 = vrot.slane %v52, 1
  %v384 = vrot.slane %v53, 1
  %v385 = vsel %vm337, %v383, %v384
  %s386 = scalar_lea.vmem %s1, 16
  %v387 = vld [vmem:[%s386] sm:$0xff]
  %v389 = vsel %vm78, %v387, 0
  %v391 = vsel %vm78, %v340, 0
  %v393 = vsel %vm78, %v343, 0
  %v395 = vsel %vm78, %v346, 0
  %v397 = vsel %vm78, %v349, 0
  %v399 = vsel %vm78, %v352, 0
  %v401 = vsel %vm78, %v355, 0
  %v403 = vsel %vm78, %v358, 0
  %v405 = vsel %vm78, %v361, 0
  %v407 = vsel %vm78, %v364, 0
  %v409 = vsel %vm78, %v367, 0
  %v411 = vsel %vm78, %v370, 0
  %v413 = vsel %vm78, %v373, 0
  %v415 = vsel %vm78, %v376, 0
  %v417 = vsel %vm78, %v379, 0
  %v419 = vsel %vm78, %v382, 0
  %v421 = vsel %vm78, %v385, 0
  %423 = vmatprep.subr.mxu0 0.0
  %424 = vmatpush1.xpose.msra.mxu0 %v391
  %425 = vmatprep.subr.mxu0 0.0
  %426 = vmatpush1.xpose.msra.mxu0 %v393
  %427 = vmatprep.subr.mxu0 0.0
  %428 = vmatpush1.xpose.msra.mxu0 %v395
  %429 = vmatprep.subr.mxu0 0.0
  %430 = vmatpush1.xpose.msra.mxu0 %v397
  %431 = vmatprep.subr.mxu0 0.0
  %432 = vmatpush1.xpose.msra.mxu0 %v399
  %433 = vmatprep.subr.mxu0 0.0
  %434 = vmatpush1.xpose.msra.mxu0 %v401
  %435 = vmatprep.subr.mxu0 0.0
  %436 = vmatpush1.xpose.msra.mxu0 %v403
  %437 = vmatprep.subr.mxu0 0.0
  %438 = vmatpush1.xpose.msra.mxu0 %v405
  %439 = vmatprep.subr.mxu0 0.0
  %440 = vmatpush1.xpose.msra.mxu0 %v407
  %441 = vmatprep.subr.mxu0 0.0
  %442 = vmatpush1.xpose.msra.mxu0 %v409
  %443 = vmatprep.subr.mxu0 0.0
  %444 = vmatpush1.xpose.msra.mxu0 %v411
  %445 = vmatprep.subr.mxu0 0.0
  %446 = vmatpush1.xpose.msra.mxu0 %v413
  %447 = vmatprep.subr.mxu0 0.0
  %448 = vmatpush1.xpose.msra.mxu0 %v415
  %449 = vmatprep.subr.mxu0 0.0
  %450 = vmatpush1.xpose.msra.mxu0 %v417
  %451 = vmatprep.subr.mxu0 0.0
  %452 = vmatpush1.xpose.msra.mxu0 %v419
  %453 = vmatprep.subr.mxu0 0.0
  %454 = vmatpush1.xpose.msra.mxu0 %v421
  %455 = vmatprep.subr.mxu0 0.0
  %456 = vmatpush1.xpose.msra.mxu0 0.0
  %457 = vmatprep.subr.mxu0 0.0
  %458 = vmatpush1.xpose.msra.mxu0 0.0
  %459 = vmatprep.subr.mxu0 0.0
  %460 = vmatpush1.xpose.msra.mxu0 0.0
  %461 = vmatprep.subr.mxu0 0.0
  %462 = vmatpush1.xpose.msra.mxu0 0.0
  %463 = vmatprep.subr.mxu0 0.0
  %464 = vmatpush1.xpose.msra.mxu0 0.0
  %465 = vmatprep.subr.mxu0 0.0
  %466 = vmatpush1.xpose.msra.mxu0 0.0
  %467 = vmatprep.subr.mxu0 0.0
  %468 = vmatpush1.xpose.msra.mxu0 0.0
  %469 = vmatprep.subr.mxu0 0.0
  %470 = vmatpush1.xpose.msra.mxu0 0.0
  %471 = vmatprep.subr.mxu0 0.0
  %472 = vmatpush1.xpose.msra.mxu0 0.0
  %473 = vmatprep.subr.mxu0 0.0
  %474 = vmatpush1.xpose.msra.mxu0 0.0
  %475 = vmatprep.subr.mxu0 0.0
  %476 = vmatpush1.xpose.msra.mxu0 0.0
  %477 = vmatprep.subr.mxu0 0.0
  %478 = vmatpush1.xpose.msra.mxu0 0.0
  %479 = vmatprep.subr.mxu0 0.0
  %480 = vmatpush1.xpose.msra.mxu0 0.0
  %481 = vmatprep.subr.mxu0 0.0
  %482 = vmatpush1.xpose.msra.mxu0 0.0
  %483 = vmatprep.subr.mxu0 0.0
  %484 = vmatpush1.xpose.msra.mxu0 0.0
  %485 = vmatprep.subr.mxu0 0.0
  %486 = vmatpush1.xpose.msra.mxu0 0.0
  %487 = vmatprep.mubr.f32.mxu0 0.0
  %488 = vmatmul.mubr.f32.gmra.mrb[0].mxu0 %v389
  %v489 = vpop.f32.mrb[0].mxu0
  %v490 = vadd.f32 0.0, %v489
  %v491 = vpop.f32.mrb[0].mxu0
  %492 = vdwg.mxu0
  %v493 = vadd.f32 %v318, %v490
  %s494 = scalar_lea.vmem %s0, 576
  %v495 = vld [vmem:[%s494] sm:$0xff]
  %v496 = vld [vmem:[%s494 + $0x8] sm:$0x1]
  %v497 = vld [vmem:[%s494 + $0x10] sm:$0xff]
  %v498 = vld [vmem:[%s494 + $0x18] sm:$0x1]
  %v499 = vld [vmem:[%s494 + $0x20] sm:$0xff]
  %v500 = vld [vmem:[%s494 + $0x28] sm:$0x1]
  %v501 = vld [vmem:[%s494 + $0x30] sm:$0xff]
  %v502 = vld [vmem:[%s494 + $0x38] sm:$0x1]
  %v503 = vld [vmem:[%s494 + $0x40] sm:$0xff]
  %v504 = vld [vmem:[%s494 + $0x48] sm:$0x1]
  %v505 = vld [vmem:[%s494 + $0x50] sm:$0xff]
  %v506 = vld [vmem:[%s494 + $0x58] sm:$0x1]
  %v507 = vld [vmem:[%s494 + $0x60] sm:$0xff]
  %v508 = vld [vmem:[%s494 + $0x68] sm:$0x1]
  %v509 = vld [vmem:[%s494 + $0x70] sm:$0xff]
  %v510 = vld [vmem:[%s494 + $0x78] sm:$0x1]
  %v511 = vld [vmem:[%s494 + $0x90] sm:$0xff]
  %v512 = vld [vmem:[%s494 + $0x98] sm:$0x1]
  %v513 = vld [vmem:[%s494 + $0xa0] sm:$0xff]
  %v514 = vld [vmem:[%s494 + $0xa8] sm:$0x1]
  %v515 = vld [vmem:[%s494 + $0xb0] sm:$0xff]
  %v516 = vld [vmem:[%s494 + $0xb8] sm:$0x1]
  %v517 = vld [vmem:[%s494 + $0xc0] sm:$0xff]
  %v518 = vld [vmem:[%s494 + $0xc8] sm:$0x1]
  %v519 = vld [vmem:[%s494 + $0xd0] sm:$0xff]
  %v520 = vld [vmem:[%s494 + $0xd8] sm:$0x1]
  %v521 = vld [vmem:[%s494 + $0xe0] sm:$0xff]
  %v522 = vld [vmem:[%s494 + $0xe8] sm:$0x1]
  %v523 = vld [vmem:[%s494 + $0xf0] sm:$0xff]
  %v524 = vld [vmem:[%s494 + $0xf8] sm:$0x1]
  %v525 = vld [vmem:[%s494 + $0x100] sm:$0xff]
  %v526 = vld [vmem:[%s494 + $0x108] sm:$0x1]
  %s527 = scalar_lea.vmem %s1, 24
  %v528 = vld [vmem:[%s527] sm:$0xff]
  %v530 = vsel %vm78, %v528, 0
  %v533 = vsel %vm78, %v495, 0
  %v536 = vsel %vm78, %v497, 0
  %v539 = vsel %vm78, %v499, 0
  %v542 = vsel %vm78, %v501, 0
  %v545 = vsel %vm78, %v503, 0
  %v548 = vsel %vm78, %v505, 0
  %v551 = vsel %vm78, %v507, 0
  %v554 = vsel %vm78, %v509, 0
  %v557 = vsel %vm78, %v511, 0
  %v560 = vsel %vm78, %v513, 0
  %v563 = vsel %vm78, %v515, 0
  %v566 = vsel %vm78, %v517, 0
  %v569 = vsel %vm78, %v519, 0
  %v572 = vsel %vm78, %v521, 0
  %v575 = vsel %vm78, %v523, 0
  %v578 = vsel %vm78, %v525, 0
  %580 = vmatprep.subr.mxu0 0.0
  %581 = vmatpush1.xpose.msra.mxu0 %v533
  %582 = vmatprep.subr.mxu0 0.0
  %583 = vmatpush1.xpose.msra.mxu0 %v536
  %584 = vmatprep.subr.mxu0 0.0
  %585 = vmatpush1.xpose.msra.mxu0 %v539
  %586 = vmatprep.subr.mxu0 0.0
  %587 = vmatpush1.xpose.msra.mxu0 %v542
  %588 = vmatprep.subr.mxu0 0.0
  %589 = vmatpush1.xpose.msra.mxu0 %v545
  %590 = vmatprep.subr.mxu0 0.0
  %591 = vmatpush1.xpose.msra.mxu0 %v548
  %592 = vmatprep.subr.mxu0 0.0
  %593 = vmatpush1.xpose.msra.mxu0 %v551
  %594 = vmatprep.subr.mxu0 0.0
  %595 = vmatpush1.xpose.msra.mxu0 %v554
  %596 = vmatprep.subr.mxu0 0.0
  %597 = vmatpush1.xpose.msra.mxu0 %v557
  %598 = vmatprep.subr.mxu0 0.0
  %599 = vmatpush1.xpose.msra.mxu0 %v560
  %600 = vmatprep.subr.mxu0 0.0
  %601 = vmatpush1.xpose.msra.mxu0 %v563
  %602 = vmatprep.subr.mxu0 0.0
  %603 = vmatpush1.xpose.msra.mxu0 %v566
  %604 = vmatprep.subr.mxu0 0.0
  %605 = vmatpush1.xpose.msra.mxu0 %v569
  %606 = vmatprep.subr.mxu0 0.0
  %607 = vmatpush1.xpose.msra.mxu0 %v572
  %608 = vmatprep.subr.mxu0 0.0
  %609 = vmatpush1.xpose.msra.mxu0 %v575
  %610 = vmatprep.subr.mxu0 0.0
  %611 = vmatpush1.xpose.msra.mxu0 %v578
  %612 = vmatprep.subr.mxu0 0.0
  %613 = vmatpush1.xpose.msra.mxu0 0.0
  %614 = vmatprep.subr.mxu0 0.0
  %615 = vmatpush1.xpose.msra.mxu0 0.0
  %616 = vmatprep.subr.mxu0 0.0
  %617 = vmatpush1.xpose.msra.mxu0 0.0
  %618 = vmatprep.subr.mxu0 0.0
  %619 = vmatpush1.xpose.msra.mxu0 0.0
  %620 = vmatprep.subr.mxu0 0.0
  %621 = vmatpush1.xpose.msra.mxu0 0.0
  %622 = vmatprep.subr.mxu0 0.0
  %623 = vmatpush1.xpose.msra.mxu0 0.0
  %624 = vmatprep.subr.mxu0 0.0
  %625 = vmatpush1.xpose.msra.mxu0 0.0
  %626 = vmatprep.subr.mxu0 0.0
  %627 = vmatpush1.xpose.msra.mxu0 0.0
  %628 = vmatprep.subr.mxu0 0.0
  %629 = vmatpush1.xpose.msra.mxu0 0.0
  %630 = vmatprep.subr.mxu0 0.0
  %631 = vmatpush1.xpose.msra.mxu0 0.0
  %632 = vmatprep.subr.mxu0 0.0
  %633 = vmatpush1.xpose.msra.mxu0 0.0
  %634 = vmatprep.subr.mxu0 0.0
  %635 = vmatpush1.xpose.msra.mxu0 0.0
  %636 = vmatprep.subr.mxu0 0.0
  %637 = vmatpush1.xpose.msra.mxu0 0.0
  %638 = vmatprep.subr.mxu0 0.0
  %639 = vmatpush1.xpose.msra.mxu0 0.0
  %640 = vmatprep.subr.mxu0 0.0
  %641 = vmatpush1.xpose.msra.mxu0 0.0
  %642 = vmatprep.subr.mxu0 0.0
  %643 = vmatpush1.xpose.msra.mxu0 0.0
  %644 = vmatprep.mubr.f32.mxu0 0.0
  %645 = vmatmul.mubr.f32.gmra.mrb[0].mxu0 %v530
  %v646 = vpop.f32.mrb[0].mxu0
  %v647 = vadd.f32 0.0, %v646
  %v648 = vpop.f32.mrb[0].mxu0
  %649 = vdwg.mxu0
  %v650 = vadd.f32 %v493, %v647
  %s651 = scalar_lea.vmem %s0, 864
  %v652 = vld [vmem:[%s651] sm:$0xff]
  %v653 = vld [vmem:[%s651 + $0x10] sm:$0xff]
  %v654 = vld [vmem:[%s651 + $0x20] sm:$0xff]
  %v655 = vld [vmem:[%s651 + $0x30] sm:$0xff]
  %v656 = vld [vmem:[%s651 + $0x40] sm:$0xff]
  %v657 = vld [vmem:[%s651 + $0x50] sm:$0xff]
  %v658 = vld [vmem:[%s651 + $0x60] sm:$0xff]
  %v659 = vld [vmem:[%s651 + $0x70] sm:$0xff]
  %v660 = vld [vmem:[%s651 + $0x90] sm:$0xff]
  %v661 = vld [vmem:[%s651 + $0xa0] sm:$0xff]
  %v662 = vld [vmem:[%s651 + $0xb0] sm:$0xff]
  %v663 = vld [vmem:[%s651 + $0xc0] sm:$0xff]
  %v664 = vld [vmem:[%s651 + $0xd0] sm:$0xff]
  %v665 = vld [vmem:[%s651 + $0xe0] sm:$0xff]
  %v666 = vld [vmem:[%s651 + $0xf0] sm:$0xff]
  %v667 = vld [vmem:[%s651 + $0x100] sm:$0xff]
  %s668 = scalar_lea.vmem %s1, 32
  %v669 = vld [vmem:[%s668] sm:$0xff]
  %v671 = vsel %vm78, %v669, 0
  %v674 = vsel %vm78, %v652, 0
  %v677 = vsel %vm78, %v653, 0
  %v680 = vsel %vm78, %v654, 0
  %v683 = vsel %vm78, %v655, 0
  %v686 = vsel %vm78, %v656, 0
  %v689 = vsel %vm78, %v657, 0
  %v692 = vsel %vm78, %v658, 0
  %v695 = vsel %vm78, %v659, 0
  %v698 = vsel %vm78, %v660, 0
  %v701 = vsel %vm78, %v661, 0
  %v704 = vsel %vm78, %v662, 0
  %v707 = vsel %vm78, %v663, 0
  %v710 = vsel %vm78, %v664, 0
  %v713 = vsel %vm78, %v665, 0
  %v716 = vsel %vm78, %v666, 0
  %v719 = vsel %vm78, %v667, 0
  %721 = vmatprep.subr.mxu0 0.0
  %722 = vmatpush1.xpose.msra.mxu0 %v674
  %723 = vmatprep.subr.mxu0 0.0
  %724 = vmatpush1.xpose.msra.mxu0 %v677
  %725 = vmatprep.subr.mxu0 0.0
  %726 = vmatpush1.xpose.msra.mxu0 %v680
  %727 = vmatprep.subr.mxu0 0.0
  %728 = vmatpush1.xpose.msra.mxu0 %v683
  %729 = vmatprep.subr.mxu0 0.0
  %730 = vmatpush1.xpose.msra.mxu0 %v686
  %731 = vmatprep.subr.mxu0 0.0
  %732 = vmatpush1.xpose.msra.mxu0 %v689
  %733 = vmatprep.subr.mxu0 0.0
  %734 = vmatpush1.xpose.msra.mxu0 %v692
  %735 = vmatprep.subr.mxu0 0.0
  %736 = vmatpush1.xpose.msra.mxu0 %v695
  %737 = vmatprep.subr.mxu0 0.0
  %738 = vmatpush1.xpose.msra.mxu0 %v698
  %739 = vmatprep.subr.mxu0 0.0
  %740 = vmatpush1.xpose.msra.mxu0 %v701
  %741 = vmatprep.subr.mxu0 0.0
  %742 = vmatpush1.xpose.msra.mxu0 %v704
  %743 = vmatprep.subr.mxu0 0.0
  %744 = vmatpush1.xpose.msra.mxu0 %v707
  %745 = vmatprep.subr.mxu0 0.0
  %746 = vmatpush1.xpose.msra.mxu0 %v710
  %747 = vmatprep.subr.mxu0 0.0
  %748 = vmatpush1.xpose.msra.mxu0 %v713
  %749 = vmatprep.subr.mxu0 0.0
  %750 = vmatpush1.xpose.msra.mxu0 %v716
  %751 = vmatprep.subr.mxu0 0.0
  %752 = vmatpush1.xpose.msra.mxu0 %v719
  %753 = vmatprep.subr.mxu0 0.0
  %754 = vmatpush1.xpose.msra.mxu0 0.0
  %755 = vmatprep.subr.mxu0 0.0
  %756 = vmatpush1.xpose.msra.mxu0 0.0
  %757 = vmatprep.subr.mxu0 0.0
  %758 = vmatpush1.xpose.msra.mxu0 0.0
  %759 = vmatprep.subr.mxu0 0.0
  %760 = vmatpush1.xpose.msra.mxu0 0.0
  %761 = vmatprep.subr.mxu0 0.0
  %762 = vmatpush1.xpose.msra.mxu0 0.0
  %763 = vmatprep.subr.mxu0 0.0
  %764 = vmatpush1.xpose.msra.mxu0 0.0
  %765 = vmatprep.subr.mxu0 0.0
  %766 = vmatpush1.xpose.msra.mxu0 0.0
  %767 = vmatprep.subr.mxu0 0.0
  %768 = vmatpush1.xpose.msra.mxu0 0.0
  %769 = vmatprep.subr.mxu0 0.0
  %770 = vmatpush1.xpose.msra.mxu0 0.0
  %771 = vmatprep.subr.mxu0 0.0
  %772 = vmatpush1.xpose.msra.mxu0 0.0
  %773 = vmatprep.subr.mxu0 0.0
  %774 = vmatpush1.xpose.msra.mxu0 0.0
  %775 = vmatprep.subr.mxu0 0.0
  %776 = vmatpush1.xpose.msra.mxu0 0.0
  %777 = vmatprep.subr.mxu0 0.0
  %778 = vmatpush1.xpose.msra.mxu0 0.0
  %779 = vmatprep.subr.mxu0 0.0
  %780 = vmatpush1.xpose.msra.mxu0 0.0
  %781 = vmatprep.subr.mxu0 0.0
  %782 = vmatpush1.xpose.msra.mxu0 0.0
  %783 = vmatprep.subr.mxu0 0.0
  %784 = vmatpush1.xpose.msra.mxu0 0.0
  %785 = vmatprep.mubr.f32.mxu0 0.0
  %786 = vmatmul.mubr.f32.gmra.mrb[0].mxu0 %v671
  %v787 = vpop.f32.mrb[0].mxu0
  %v788 = vadd.f32 0.0, %v787
  %v789 = vpop.f32.mrb[0].mxu0
  %790 = vdwg.mxu0
  %v791 = vadd.f32 %v650, %v788
  %v808 = vrot.slane %v495, 1
  %v809 = vrot.slane %v496, 1
  %v810 = vsel %vm337, %v808, %v809
  %v811 = vrot.slane %v497, 1
  %v812 = vrot.slane %v498, 1
  %v813 = vsel %vm337, %v811, %v812
  %v814 = vrot.slane %v499, 1
  %v815 = vrot.slane %v500, 1
  %v816 = vsel %vm337, %v814, %v815
  %v817 = vrot.slane %v501, 1
  %v818 = vrot.slane %v502, 1
  %v819 = vsel %vm337, %v817, %v818
  %v820 = vrot.slane %v503, 1
  %v821 = vrot.slane %v504, 1
  %v822 = vsel %vm337, %v820, %v821
  %v823 = vrot.slane %v505, 1
  %v824 = vrot.slane %v506, 1
  %v825 = vsel %vm337, %v823, %v824
  %v826 = vrot.slane %v507, 1
  %v827 = vrot.slane %v508, 1
  %v828 = vsel %vm337, %v826, %v827
  %v829 = vrot.slane %v509, 1
  %v830 = vrot.slane %v510, 1
  %v831 = vsel %vm337, %v829, %v830
  %v832 = vrot.slane %v511, 1
  %v833 = vrot.slane %v512, 1
  %v834 = vsel %vm337, %v832, %v833
  %v835 = vrot.slane %v513, 1
  %v836 = vrot.slane %v514, 1
  %v837 = vsel %vm337, %v835, %v836
  %v838 = vrot.slane %v515, 1
  %v839 = vrot.slane %v516, 1
  %v840 = vsel %vm337, %v838, %v839
  %v841 = vrot.slane %v517, 1
  %v842 = vrot.slane %v518, 1
  %v843 = vsel %vm337, %v841, %v842
  %v844 = vrot.slane %v519, 1
  %v845 = vrot.slane %v520, 1
  %v846 = vsel %vm337, %v844, %v845
  %v847 = vrot.slane %v521, 1
  %v848 = vrot.slane %v522, 1
  %v849 = vsel %vm337, %v847, %v848
  %v850 = vrot.slane %v523, 1
  %v851 = vrot.slane %v524, 1
  %v852 = vsel %vm337, %v850, %v851
  %v853 = vrot.slane %v525, 1
  %v854 = vrot.slane %v526, 1
  %v855 = vsel %vm337, %v853, %v854
  %s856 = scalar_lea.vmem %s1, 40
  %v857 = vld [vmem:[%s856] sm:$0xff]
  %v859 = vsel %vm78, %v857, 0
  %v861 = vsel %vm78, %v810, 0
  %v863 = vsel %vm78, %v813, 0
  %v865 = vsel %vm78, %v816, 0
  %v867 = vsel %vm78, %v819, 0
  %v869 = vsel %vm78, %v822, 0
  %v871 = vsel %vm78, %v825, 0
  %v873 = vsel %vm78, %v828, 0
  %v875 = vsel %vm78, %v831, 0
  %v877 = vsel %vm78, %v834, 0
  %v879 = vsel %vm78, %v837, 0
  %v881 = vsel %vm78, %v840, 0
  %v883 = vsel %vm78, %v843, 0
  %v885 = vsel %vm78, %v846, 0
  %v887 = vsel %vm78, %v849, 0
  %v889 = vsel %vm78, %v852, 0
  %v891 = vsel %vm78, %v855, 0
  %893 = vmatprep.subr.mxu0 0.0
  %894 = vmatpush1.xpose.msra.mxu0 %v861
  %895 = vmatprep.subr.mxu0 0.0
  %896 = vmatpush1.xpose.msra.mxu0 %v863
  %897 = vmatprep.subr.mxu0 0.0
  %898 = vmatpush1.xpose.msra.mxu0 %v865
  %899 = vmatprep.subr.mxu0 0.0
  %900 = vmatpush1.xpose.msra.mxu0 %v867
  %901 = vmatprep.subr.mxu0 0.0
  %902 = vmatpush1.xpose.msra.mxu0 %v869
  %903 = vmatprep.subr.mxu0 0.0
  %904 = vmatpush1.xpose.msra.mxu0 %v871
  %905 = vmatprep.subr.mxu0 0.0
  %906 = vmatpush1.xpose.msra.mxu0 %v873
  %907 = vmatprep.subr.mxu0 0.0
  %908 = vmatpush1.xpose.msra.mxu0 %v875
  %909 = vmatprep.subr.mxu0 0.0
  %910 = vmatpush1.xpose.msra.mxu0 %v877
  %911 = vmatprep.subr.mxu0 0.0
  %912 = vmatpush1.xpose.msra.mxu0 %v879
  %913 = vmatprep.subr.mxu0 0.0
  %914 = vmatpush1.xpose.msra.mxu0 %v881
  %915 = vmatprep.subr.mxu0 0.0
  %916 = vmatpush1.xpose.msra.mxu0 %v883
  %917 = vmatprep.subr.mxu0 0.0
  %918 = vmatpush1.xpose.msra.mxu0 %v885
  %919 = vmatprep.subr.mxu0 0.0
  %920 = vmatpush1.xpose.msra.mxu0 %v887
  %921 = vmatprep.subr.mxu0 0.0
  %922 = vmatpush1.xpose.msra.mxu0 %v889
  %923 = vmatprep.subr.mxu0 0.0
  %924 = vmatpush1.xpose.msra.mxu0 %v891
  %925 = vmatprep.subr.mxu0 0.0
  %926 = vmatpush1.xpose.msra.mxu0 0.0
  %927 = vmatprep.subr.mxu0 0.0
  %928 = vmatpush1.xpose.msra.mxu0 0.0
  %929 = vmatprep.subr.mxu0 0.0
  %930 = vmatpush1.xpose.msra.mxu0 0.0
  %931 = vmatprep.subr.mxu0 0.0
  %932 = vmatpush1.xpose.msra.mxu0 0.0
  %933 = vmatprep.subr.mxu0 0.0
  %934 = vmatpush1.xpose.msra.mxu0 0.0
  %935 = vmatprep.subr.mxu0 0.0
  %936 = vmatpush1.xpose.msra.mxu0 0.0
  %937 = vmatprep.subr.mxu0 0.0
  %938 = vmatpush1.xpose.msra.mxu0 0.0
  %939 = vmatprep.subr.mxu0 0.0
  %940 = vmatpush1.xpose.msra.mxu0 0.0
  %941 = vmatprep.subr.mxu0 0.0
  %942 = vmatpush1.xpose.msra.mxu0 0.0
  %943 = vmatprep.subr.mxu0 0.0
  %944 = vmatpush1.xpose.msra.mxu0 0.0
  %945 = vmatprep.subr.mxu0 0.0
  %946 = vmatpush1.xpose.msra.mxu0 0.0
  %947 = vmatprep.subr.mxu0 0.0
  %948 = vmatpush1.xpose.msra.mxu0 0.0
  %949 = vmatprep.subr.mxu0 0.0
  %950 = vmatpush1.xpose.msra.mxu0 0.0
  %951 = vmatprep.subr.mxu0 0.0
  %952 = vmatpush1.xpose.msra.mxu0 0.0
  %953 = vmatprep.subr.mxu0 0.0
  %954 = vmatpush1.xpose.msra.mxu0 0.0
  %955 = vmatprep.subr.mxu0 0.0
  %956 = vmatpush1.xpose.msra.mxu0 0.0
  %957 = vmatprep.mubr.f32.mxu0 0.0
  %958 = vmatmul.mubr.f32.gmra.mrb[0].mxu0 %v859
  %v959 = vpop.f32.mrb[0].mxu0
  %v960 = vadd.f32 0.0, %v959
  %v961 = vpop.f32.mrb[0].mxu0
  %962 = vdwg.mxu0
  %v963 = vadd.f32 %v791, %v960
  %s964 = scalar_lea.vmem %s1, 48
  %v965 = vld [vmem:[%s964] sm:$0xff]
  %v967 = vsel %vm78, %v965, 0
  %v970 = vsel %vm78, %v36, 0
  %v973 = vsel %vm78, %v54, 0
  %975 = vmatprep.subr.mxu0 0.0
  %976 = vmatpush1.xpose.msra.mxu0 %v207
  %977 = vmatprep.subr.mxu0 0.0
  %978 = vmatpush1.xpose.msra.mxu0 %v210
  %979 = vmatprep.subr.mxu0 0.0
  %980 = vmatpush1.xpose.msra.mxu0 %v213
  %981 = vmatprep.subr.mxu0 0.0
  %982 = vmatpush1.xpose.msra.mxu0 %v216
  %983 = vmatprep.subr.mxu0 0.0
  %984 = vmatpush1.xpose.msra.mxu0 %v219
  %985 = vmatprep.subr.mxu0 0.0
  %986 = vmatpush1.xpose.msra.mxu0 %v222
  %987 = vmatprep.subr.mxu0 0.0
  %988 = vmatpush1.xpose.msra.mxu0 %v225
  %989 = vmatprep.subr.mxu0 0.0
  %990 = vmatpush1.xpose.msra.mxu0 %v970
  %991 = vmatprep.subr.mxu0 0.0
  %992 = vmatpush1.xpose.msra.mxu0 %v231
  %993 = vmatprep.subr.mxu0 0.0
  %994 = vmatpush1.xpose.msra.mxu0 %v234
  %995 = vmatprep.subr.mxu0 0.0
  %996 = vmatpush1.xpose.msra.mxu0 %v237
  %997 = vmatprep.subr.mxu0 0.0
  %998 = vmatpush1.xpose.msra.mxu0 %v240
  %999 = vmatprep.subr.mxu0 0.0
  %1000 = vmatpush1.xpose.msra.mxu0 %v243
  %1001 = vmatprep.subr.mxu0 0.0
  %1002 = vmatpush1.xpose.msra.mxu0 %v246
  %1003 = vmatprep.subr.mxu0 0.0
  %1004 = vmatpush1.xpose.msra.mxu0 %v249
  %1005 = vmatprep.subr.mxu0 0.0
  %1006 = vmatpush1.xpose.msra.mxu0 %v973
  %1007 = vmatprep.subr.mxu0 0.0
  %1008 = vmatpush1.xpose.msra.mxu0 0.0
  %1009 = vmatprep.subr.mxu0 0.0
  %1010 = vmatpush1.xpose.msra.mxu0 0.0
  %1011 = vmatprep.subr.mxu0 0.0
  %1012 = vmatpush1.xpose.msra.mxu0 0.0
  %1013 = vmatprep.subr.mxu0 0.0
  %1014 = vmatpush1.xpose.msra.mxu0 0.0
  %1015 = vmatprep.subr.mxu0 0.0
  %1016 = vmatpush1.xpose.msra.mxu0 0.0
  %1017 = vmatprep.subr.mxu0 0.0
  %1018 = vmatpush1.xpose.msra.mxu0 0.0
  %1019 = vmatprep.subr.mxu0 0.0
  %1020 = vmatpush1.xpose.msra.mxu0 0.0
  %1021 = vmatprep.subr.mxu0 0.0
  %1022 = vmatpush1.xpose.msra.mxu0 0.0
  %1023 = vmatprep.subr.mxu0 0.0
  %1024 = vmatpush1.xpose.msra.mxu0 0.0
  %1025 = vmatprep.subr.mxu0 0.0
  %1026 = vmatpush1.xpose.msra.mxu0 0.0
  %1027 = vmatprep.subr.mxu0 0.0
  %1028 = vmatpush1.xpose.msra.mxu0 0.0
  %1029 = vmatprep.subr.mxu0 0.0
  %1030 = vmatpush1.xpose.msra.mxu0 0.0
  %1031 = vmatprep.subr.mxu0 0.0
  %1032 = vmatpush1.xpose.msra.mxu0 0.0
  %1033 = vmatprep.subr.mxu0 0.0
  %1034 = vmatpush1.xpose.msra.mxu0 0.0
  %1035 = vmatprep.subr.mxu0 0.0
  %1036 = vmatpush1.xpose.msra.mxu0 0.0
  %1037 = vmatprep.subr.mxu0 0.0
  %1038 = vmatpush1.xpose.msra.mxu0 0.0
  %1039 = vmatprep.mubr.f32.mxu0 0.0
  %1040 = vmatmul.mubr.f32.gmra.mrb[0].mxu0 %v967
  %v1041 = vpop.f32.mrb[0].mxu0
  %v1042 = vadd.f32 0.0, %v1041
  %v1043 = vpop.f32.mrb[0].mxu0
  %1044 = vdwg.mxu0
  %v1045 = vadd.f32 %v963, %v1042
  %s1046 = scalar_lea.vmem %s1, 56
  %v1047 = vld [vmem:[%s1046] sm:$0xff]
  %v1049 = vsel %vm78, %v1047, 0
  %v1052 = vsel %vm78, %v66, 0
  %v1055 = vsel %vm78, %v75, 0
  %1057 = vmatprep.subr.mxu0 0.0
  %1058 = vmatpush1.xpose.msra.mxu0 %v86
  %1059 = vmatprep.subr.mxu0 0.0
  %1060 = vmatpush1.xpose.msra.mxu0 %v89
  %1061 = vmatprep.subr.mxu0 0.0
  %1062 = vmatpush1.xpose.msra.mxu0 %v92
  %1063 = vmatprep.subr.mxu0 0.0
  %1064 = vmatpush1.xpose.msra.mxu0 %v95
  %1065 = vmatprep.subr.mxu0 0.0
  %1066 = vmatpush1.xpose.msra.mxu0 %v98
  %1067 = vmatprep.subr.mxu0 0.0
  %1068 = vmatpush1.xpose.msra.mxu0 %v101
  %1069 = vmatprep.subr.mxu0 0.0
  %1070 = vmatpush1.xpose.msra.mxu0 %v104
  %1071 = vmatprep.subr.mxu0 0.0
  %1072 = vmatpush1.xpose.msra.mxu0 %v1052
  %1073 = vmatprep.subr.mxu0 0.0
  %1074 = vmatpush1.xpose.msra.mxu0 %v110
  %1075 = vmatprep.subr.mxu0 0.0
  %1076 = vmatpush1.xpose.msra.mxu0 %v113
  %1077 = vmatprep.subr.mxu0 0.0
  %1078 = vmatpush1.xpose.msra.mxu0 %v116
  %1079 = vmatprep.subr.mxu0 0.0
  %1080 = vmatpush1.xpose.msra.mxu0 %v119
  %1081 = vmatprep.subr.mxu0 0.0
  %1082 = vmatpush1.xpose.msra.mxu0 %v122
  %1083 = vmatprep.subr.mxu0 0.0
  %1084 = vmatpush1.xpose.msra.mxu0 %v125
  %1085 = vmatprep.subr.mxu0 0.0
  %1086 = vmatpush1.xpose.msra.mxu0 %v128
  %1087 = vmatprep.subr.mxu0 0.0
  %1088 = vmatpush1.xpose.msra.mxu0 %v1055
  %1089 = vmatprep.subr.mxu0 0.0
  %1090 = vmatpush1.xpose.msra.mxu0 0.0
  %1091 = vmatprep.subr.mxu0 0.0
  %1092 = vmatpush1.xpose.msra.mxu0 0.0
  %1093 = vmatprep.subr.mxu0 0.0
  %1094 = vmatpush1.xpose.msra.mxu0 0.0
  %1095 = vmatprep.subr.mxu0 0.0
  %1096 = vmatpush1.xpose.msra.mxu0 0.0
  %1097 = vmatprep.subr.mxu0 0.0
  %1098 = vmatpush1.xpose.msra.mxu0 0.0
  %1099 = vmatprep.subr.mxu0 0.0
  %1100 = vmatpush1.xpose.msra.mxu0 0.0
  %1101 = vmatprep.subr.mxu0 0.0
  %1102 = vmatpush1.xpose.msra.mxu0 0.0
  %1103 = vmatprep.subr.mxu0 0.0
  %1104 = vmatpush1.xpose.msra.mxu0 0.0
  %1105 = vmatprep.subr.mxu0 0.0
  %1106 = vmatpush1.xpose.msra.mxu0 0.0
  %1107 = vmatprep.subr.mxu0 0.0
  %1108 = vmatpush1.xpose.msra.mxu0 0.0
  %1109 = vmatprep.subr.mxu0 0.0
  %1110 = vmatpush1.xpose.msra.mxu0 0.0
  %1111 = vmatprep.subr.mxu0 0.0
  %1112 = vmatpush1.xpose.msra.mxu0 0.0
  %1113 = vmatprep.subr.mxu0 0.0
  %1114 = vmatpush1.xpose.msra.mxu0 0.0
  %1115 = vmatprep.subr.mxu0 0.0
  %1116 = vmatpush1.xpose.msra.mxu0 0.0
  %1117 = vmatprep.subr.mxu0 0.0
  %1118 = vmatpush1.xpose.msra.mxu0 0.0
  %1119 = vmatprep.subr.mxu0 0.0
  %1120 = vmatpush1.xpose.msra.mxu0 0.0
  %1121 = vmatprep.mubr.f32.mxu0 0.0
  %1122 = vmatmul.mubr.f32.gmra.mrb[0].mxu0 %v1049
  %v1123 = vpop.f32.mrb[0].mxu0
  %v1124 = vadd.f32 0.0, %v1123
  %v1125 = vpop.f32.mrb[0].mxu0
  %1126 = vdwg.mxu0
  %v1127 = vadd.f32 %v1045, %v1124
  %v1130 = vrot.slane %v36, 1
  %v1131 = vrot.slane %v37, 1
  %v1132 = vsel %vm337, %v1130, %v1131
  %v1133 = vrot.slane %v54, 1
  %v1134 = vrot.slane %v55, 1
  %v1135 = vsel %vm337, %v1133, %v1134
  %s1136 = scalar_lea.vmem %s1, 64
  %v1137 = vld [vmem:[%s1136] sm:$0xff]
  %v1139 = vsel %vm78, %v1137, 0
  %v1141 = vsel %vm78, %v1132, 0
  %v1143 = vsel %vm78, %v1135, 0
  %1145 = vmatprep.subr.mxu0 0.0
  %1146 = vmatpush1.xpose.msra.mxu0 %v393
  %1147 = vmatprep.subr.mxu0 0.0
  %1148 = vmatpush1.xpose.msra.mxu0 %v395
  %1149 = vmatprep.subr.mxu0 0.0
  %1150 = vmatpush1.xpose.msra.mxu0 %v397
  %1151 = vmatprep.subr.mxu0 0.0
  %1152 = vmatpush1.xpose.msra.mxu0 %v399
  %1153 = vmatprep.subr.mxu0 0.0
  %1154 = vmatpush1.xpose.msra.mxu0 %v401
  %1155 = vmatprep.subr.mxu0 0.0
  %1156 = vmatpush1.xpose.msra.mxu0 %v403
  %1157 = vmatprep.subr.mxu0 0.0
  %1158 = vmatpush1.xpose.msra.mxu0 %v405
  %1159 = vmatprep.subr.mxu0 0.0
  %1160 = vmatpush1.xpose.msra.mxu0 %v1141
  %1161 = vmatprep.subr.mxu0 0.0
  %1162 = vmatpush1.xpose.msra.mxu0 %v409
  %1163 = vmatprep.subr.mxu0 0.0
  %1164 = vmatpush1.xpose.msra.mxu0 %v411
  %1165 = vmatprep.subr.mxu0 0.0
  %1166 = vmatpush1.xpose.msra.mxu0 %v413
  %1167 = vmatprep.subr.mxu0 0.0
  %1168 = vmatpush1.xpose.msra.mxu0 %v415
  %1169 = vmatprep.subr.mxu0 0.0
  %1170 = vmatpush1.xpose.msra.mxu0 %v417
  %1171 = vmatprep.subr.mxu0 0.0
  %1172 = vmatpush1.xpose.msra.mxu0 %v419
  %1173 = vmatprep.subr.mxu0 0.0
  %1174 = vmatpush1.xpose.msra.mxu0 %v421
  %1175 = vmatprep.subr.mxu0 0.0
  %1176 = vmatpush1.xpose.msra.mxu0 %v1143
  %1177 = vmatprep.subr.mxu0 0.0
  %1178 = vmatpush1.xpose.msra.mxu0 0.0
  %1179 = vmatprep.subr.mxu0 0.0
  %1180 = vmatpush1.xpose.msra.mxu0 0.0
  %1181 = vmatprep.subr.mxu0 0.0
  %1182 = vmatpush1.xpose.msra.mxu0 0.0
  %1183 = vmatprep.subr.mxu0 0.0
  %1184 = vmatpush1.xpose.msra.mxu0 0.0
  %1185 = vmatprep.subr.mxu0 0.0
  %1186 = vmatpush1.xpose.msra.mxu0 0.0
  %1187 = vmatprep.subr.mxu0 0.0
  %1188 = vmatpush1.xpose.msra.mxu0 0.0
  %1189 = vmatprep.subr.mxu0 0.0
  %1190 = vmatpush1.xpose.msra.mxu0 0.0
  %1191 = vmatprep.subr.mxu0 0.0
  %1192 = vmatpush1.xpose.msra.mxu0 0.0
  %1193 = vmatprep.subr.mxu0 0.0
  %1194 = vmatpush1.xpose.msra.mxu0 0.0
  %1195 = vmatprep.subr.mxu0 0.0
  %1196 = vmatpush1.xpose.msra.mxu0 0.0
  %1197 = vmatprep.subr.mxu0 0.0
  %1198 = vmatpush1.xpose.msra.mxu0 0.0
  %1199 = vmatprep.subr.mxu0 0.0
  %1200 = vmatpush1.xpose.msra.mxu0 0.0
  %1201 = vmatprep.subr.mxu0 0.0
  %1202 = vmatpush1.xpose.msra.mxu0 0.0
  %1203 = vmatprep.subr.mxu0 0.0
  %1204 = vmatpush1.xpose.msra.mxu0 0.0
  %1205 = vmatprep.subr.mxu0 0.0
  %1206 = vmatpush1.xpose.msra.mxu0 0.0
  %1207 = vmatprep.subr.mxu0 0.0
  %1208 = vmatpush1.xpose.msra.mxu0 0.0
  %1209 = vmatprep.mubr.f32.mxu0 0.0
  %1210 = vmatmul.mubr.f32.gmra.mrb[0].mxu0 %v1139
  %v1211 = vpop.f32.mrb[0].mxu0
  %v1212 = vadd.f32 0.0, %v1211
  %v1213 = vpop.f32.mrb[0].mxu0
  %1214 = vdwg.mxu0
  %v1215 = vadd.f32 %v1127, %v1212
  %v1216 = vld [vmem:[%s2] sm:$0xff]
  %1218 = vset.pattern.permute.xlu0 0
  %1219 = vperm.xlu0 %1218, %v1216
  %v1220 = vpop.permute.xlu0 %1219
  %v1222 = vadd.f32 %v1215, %v1220
  %1223 = vadd.xlane.f32.xlu0 %v1222
  %v1224 = vpop.xlane.xlu0 %1223
  %v1225 = vmul.f32 %v1224, 0.0078125
  %v1226 = vsub.f32 %v1222, %v1225
  %v1227 = vmul.f32 %v1226, %v1226
  %1228 = vadd.xlane.f32.xlu0 %v1227
  %v1229 = vpop.xlane.xlu0 %1228
  %v1230 = vmul.f32 %v1229, 0.0078125
  %v1231 = vld [vmem:[%s3] sm:$0xff]
  %v1232 = vadd.f32 %v1230, 1e-05
  %v1233 = vrsqrt.pop %v1232
  %v1234 = vmul.f32 %v1231, %v1233
  %1236 = vset.pattern.permute.xlu0 0
  %1237 = vperm.xlu0 %1236, %v1234
  %v1238 = vpop.permute.xlu0 %1237
  %v1240 = vmul.f32 %v1226, %v1238
  %v1241 = vld [vmem:[%s4] sm:$0xff]
  %1243 = vset.pattern.permute.xlu0 0
  %1244 = vperm.xlu0 %1243, %v1241
  %v1245 = vpop.permute.xlu0 %1244
  %v1247 = vadd.f32 %v1240, %v1245
  %v1248 = vmax.f32 %v1247, 0.0
  %1249 = vst [vmem:[%s5] sm:$0xff] %v1248
  // Predicated region
  $region22: #{conv_reg_forward.1} parent=0 // pred_check
    _
  $region23: #{conv_reg_forward.1} parent=0 // pred_check_branch
    %1251 = sbr.rel (0) target = $region25
  $region24: #{conv_reg_forward.1} parent=0 // pred_region
    _
  $region25: #{conv_reg_forward.1} parent=0 // pred_fallthru
    _
  // Predicated region
  $region26: #{conv_reg_forward.1} parent=0 // pred_check
    _
  $region27: #{conv_reg_forward.1} parent=0 // pred_check_branch
    %1253 = sbr.rel (0) target = $region29
  $region28: #{conv_reg_forward.1} parent=0 // pred_region
    _
  $region29: #{conv_reg_forward.1} parent=0 // pred_fallthru
    _

</llo_original>
